<compile_context>
chip_gen: v5e
topology: v5e:2x2
jax: 0.10.0
libtpu: 0.0.40
codegen_flags: <defaults>
</compile_context>

<pallas_src>
import functools

import jax
import jax.numpy as jnp
from jax.experimental import pallas as pl
from jax.experimental.pallas import tpu as pltpu


def _dense_layer_kernel(x_ref, scale_ref, shift_ref, w_ref, o_ref, astack_ref, *, W, Cin):
    # x_ref:      (1, Cp, P)        one image; channels zero-padded to Cp (mult. of 8), P = H*W
    # scale_ref:  (Cp, 1)  f32      folded BN scale = gamma / sqrt(var + eps)   (0 in pad rows)
    # shift_ref:  (Cp, 1)  f32      folded BN shift = beta - mean * scale       (0 in pad rows)
    # w_ref:      (Cout, 9*Cp) f32  conv weights; column k = (kh*3 + kw)*Cp + c (0 in pad cols)
    # o_ref:      (1, Cin+Cout, P)  fused output: rows [0:Cin] = x, rows [Cin:] = conv branch
    # astack_ref: (9*Cp, P) f32     scratch: 9 shifted+masked copies of the activation
    Cp = x_ref.shape[1]
    P = x_ref.shape[2]
    Cout = w_ref.shape[0]

    # ---- BatchNorm (inference, f32) + ReLU ----
    xf = x_ref[0].astype(jnp.float32)                               # (Cp, P)
    a = jnp.maximum(xf * scale_ref[...] + shift_ref[...], 0.0)      # (Cp, P)

    # Flat pixel index / column-within-row index, used for border masking.
    col = jax.lax.broadcasted_iota(jnp.int32, (Cp, P), 1)
    wcol = col % W

    # ---- Build tap-stacked activation: one aligned (Cp, P) store per tap ----
    t = 0
    for kh in range(3):
        for kw in range(3):
            dh, dw = kh - 1, kw - 1
            d = dh * W + dw                                         # flat-pixel shift
            if d == 0:
                piece = a
            else:
                s = d % P
                # Cyclic lane shift: piece[c, p] = a[c, (p + d) % P]
                # (equivalently pltpu.roll(a, (-d) % P, axis=1); lowers to XLU rotates)
                piece = jnp.concatenate([a[:, s:], a[:, :s]], axis=1)
            # Zero positions whose shifted source falls outside the image.
            conds = []
            if dh == -1:
                conds.append(col >= W)            # source row h-1 exists
            elif dh == 1:
                conds.append(col < P - W)         # source row h+1 exists
            if dw == -1:
                conds.append(wcol >= 1)           # source col w-1 exists
            elif dw == 1:
                conds.append(wcol < W - 1)        # source col w+1 exists
            if conds:
                valid = conds[0]
                for c in conds[1:]:
                    valid = valid & c
                piece = jnp.where(valid, piece, 0.0)
            astack_ref[t * Cp:(t + 1) * Cp, :] = piece
            t += 1

    # ---- 3x3 conv as a single MXU matmul: (Cout, 9*Cp) @ (9*Cp, P) -> (Cout, P) ----
    conv = jnp.dot(w_ref[...], astack_ref[...], preferred_element_type=jnp.float32)

    # ---- Fused channel concat (lane-dense stores, 256 lanes) ----
    o_ref[0, 0:Cin, :] = x_ref[0, 0:Cin, :]
    o_ref[0, Cin:Cin + Cout, :] = conv.astype(o_ref.dtype)


def dense_layer_forward(x_nchw, gamma, beta, running_mean, running_var, conv_w, eps=1e-5):
    """Equivalent of DenseLayer.forward: returns cat([x, BNReLUConv(x)], dim=1) in NCHW."""
    N, Cin, H, W = x_nchw.shape
    Cout = conv_w.shape[0]
    P = H * W
    Cp = ((Cin + 7) // 8) * 8            # pad channels to a sublane multiple

    # Folded BN parameters, computed and kept in f32 (precision-safe even for bf16 x).
    scale = gamma.astype(jnp.float32) / jnp.sqrt(running_var.astype(jnp.float32) + eps)
    shift = beta.astype(jnp.float32) - running_mean.astype(jnp.float32) * scale
    scale_p = jnp.zeros((Cp, 1), jnp.float32).at[:Cin, 0].set(scale)
    shift_p = jnp.zeros((Cp, 1), jnp.float32).at[:Cin, 0].set(shift)

    # x: (N, Cin, H, W) -> (N, Cp, P): flattened spatial in the lane dim, zero-padded channels.
    x_flat = jnp.pad(x_nchw.reshape(N, Cin, P), ((0, 0), (0, Cp - Cin), (0, 0)))

    # Conv weights (Cout, Cin, 3, 3) -> (Cout, 9*Cp); column index = (kh*3 + kw)*Cp + c.
    w = jnp.transpose(conv_w.astype(jnp.float32), (0, 2, 3, 1))     # (Cout, 3, 3, Cin)
    w = jnp.pad(w, ((0, 0), (0, 0), (0, 0), (0, Cp - Cin)))         # (Cout, 3, 3, Cp)
    w_mat = w.reshape(Cout, 9 * Cp)

    kernel = functools.partial(_dense_layer_kernel, W=W, Cin=Cin)

    out_flat = pl.pallas_call(
        kernel,
        out_shape=jax.ShapeDtypeStruct((N, Cin + Cout, P), x_nchw.dtype),
        grid_spec=pltpu.PrefetchScalarGridSpec(
            num_scalar_prefetch=0,
            grid=(N,),
            in_specs=[
                pl.BlockSpec((1, Cp, P), lambda n: (n, 0, 0)),
                pl.BlockSpec((Cp, 1), lambda n: (0, 0)),
                pl.BlockSpec((Cp, 1), lambda n: (0, 0)),
                pl.BlockSpec((Cout, 9 * Cp), lambda n: (0, 0)),
            ],
            out_specs=pl.BlockSpec((1, Cin + Cout, P), lambda n: (n, 0, 0)),
            scratch_shapes=[pltpu.VMEM((9 * Cp, P), jnp.float32)],
        ),
        compiler_params=pltpu.CompilerParams(
            dimension_semantics=("parallel",),
            vmem_limit_bytes=32 * 1024 * 1024,
        ),
    )(x_flat, scale_p, shift_p, w_mat)

    # Free reshape back to NCHW; concat was fused in the kernel, no transposes needed.
    return out_flat.reshape(N, Cin + Cout, H, W)


def _reference_forward(x_nchw, gamma, beta, running_mean, running_var, conv_w, eps=1e-5):
    # Pure-JAX reference of the same (inference-mode) forward.
    scale = (gamma / jnp.sqrt(running_var + eps)).reshape(1, -1, 1, 1)
    shift = (beta - running_mean * gamma / jnp.sqrt(running_var + eps)).reshape(1, -1, 1, 1)
    a = jnp.maximum(x_nchw * scale + shift, 0.0)
    out = jax.lax.conv_general_dilated(
        a, conv_w, window_strides=(1, 1), padding=((1, 1), (1, 1)),
        dimension_numbers=("NCHW", "OIHW", "NCHW"))
    return jnp.concatenate([x_nchw, out], axis=1)


if __name__ == "__main__":
    # Small shapes: batch=2, in_channels=4, spatial=16x16, growth_rate=8, dropout=0 (eval identity).
    N, Cin, H, W = 2, 4, 16, 16
    growth_rate = 8

    key = jax.random.PRNGKey(0)
    k_x, k_g, k_b, k_m, k_v, k_w = jax.random.split(key, 6)

    x = jax.random.normal(k_x, (N, Cin, H, W), dtype=jnp.float32)
    gamma = jax.random.uniform(k_g, (Cin,), minval=0.5, maxval=1.5, dtype=jnp.float32)
    beta = 0.1 * jax.random.normal(k_b, (Cin,), dtype=jnp.float32)
    running_mean = 0.1 * jax.random.normal(k_m, (Cin,), dtype=jnp.float32)
    running_var = jax.random.uniform(k_v, (Cin,), minval=0.5, maxval=1.5, dtype=jnp.float32)
    conv_w = 0.1 * jax.random.normal(k_w, (growth_rate, Cin, 3, 3), dtype=jnp.float32)

    out = dense_layer_forward(x, gamma, beta, running_mean, running_var, conv_w)
    out = jax.block_until_ready(out)

    ref = _reference_forward(x, gamma, beta, running_mean, running_var, conv_w)
    assert out.shape == (N, Cin + growth_rate, H, W), out.shape
    assert jnp.allclose(out, ref, rtol=1e-4, atol=1e-4), float(jnp.max(jnp.abs(out - ref)))

    print("KERNEL_OK")
</pallas_src>

<mosaic_0001>
module attributes {stable_mosaic.version = 11 : i64} {
  func.func @_dense_layer_kernel(%arg0: i32, %arg1: memref<1x8x256xf32, #tpu.memory_space<vmem>>, %arg2: memref<8x1xf32, #tpu.memory_space<vmem>>, %arg3: memref<8x1xf32, #tpu.memory_space<vmem>>, %arg4: memref<8x72xf32, #tpu.memory_space<vmem>>, %arg5: memref<1x12x256xf32, #tpu.memory_space<vmem>>, %arg6: memref<72x256xf32, #tpu.memory_space<vmem>>) attributes {dimension_semantics = [#tpu.dimension_semantics<parallel>], iteration_bounds = array<i64: 2>, scalar_prefetch = 0 : i64, scratch_operands = 1 : i64, tpu.core_type = #tpu.core_type<tc>, window_params = [{transform_indices = @transform_0, window_bounds = array<i64: 1, 8, 256>}, {pipeline_mode = #tpu.pipeline_mode<synchronous>, transform_indices = @transform_1, window_bounds = array<i64: 8, 1>}, {pipeline_mode = #tpu.pipeline_mode<synchronous>, transform_indices = @transform_2, window_bounds = array<i64: 8, 1>}, {pipeline_mode = #tpu.pipeline_mode<synchronous>, transform_indices = @transform_3, window_bounds = array<i64: 8, 72>}, {transform_indices = @transform_4, window_bounds = array<i64: 1, 12, 256>}]} {
    %c0 = arith.constant 0 : index
    %c0_0 = arith.constant 0 : index
    %c0_1 = arith.constant 0 : index
    %0 = vector.load %arg1[%c0, %c0_0, %c0_1] : memref<1x8x256xf32, #tpu.memory_space<vmem>>, vector<1x8x256xf32>
    %1 = vector.shape_cast %0 : vector<1x8x256xf32> to vector<8x256xf32>
    %c0_2 = arith.constant 0 : index
    %c0_3 = arith.constant 0 : index
    %2 = vector.load %arg2[%c0_2, %c0_3] : memref<8x1xf32, #tpu.memory_space<vmem>>, vector<8x1xf32>
    %3 = vector.broadcast %2 : vector<8x1xf32> to vector<8x256xf32>
    %4 = arith.mulf %1, %3 : vector<8x256xf32>
    %c0_4 = arith.constant 0 : index
    %c0_5 = arith.constant 0 : index
    %5 = vector.load %arg3[%c0_4, %c0_5] : memref<8x1xf32, #tpu.memory_space<vmem>>, vector<8x1xf32>
    %6 = vector.broadcast %5 : vector<8x1xf32> to vector<8x256xf32>
    %7 = arith.addf %4, %6 : vector<8x256xf32>
    %cst = arith.constant 0.000000e+00 : f32
    %8 = vector.broadcast %cst : f32 to vector<8x256xf32>
    %9 = arith.maximumf %7, %8 : vector<8x256xf32>
    %10 = tpu.iota {dimensions = array<i32: 1>} : vector<8x256xi32>
    %c16_i32 = arith.constant 16 : i32
    %c0_i32 = arith.constant 0 : i32
    %11 = arith.cmpi eq, %c16_i32, %c0_i32 : i32
    %c1_i32 = arith.constant 1 : i32
    %12 = arith.select %11, %c1_i32, %c16_i32 : i32
    %13 = vector.broadcast %12 : i32 to vector<8x256xi32>
    %14 = arith.remsi %10, %13 : vector<8x256xi32>
    %c0_i32_6 = arith.constant 0 : i32
    %15 = vector.broadcast %c0_i32_6 : i32 to vector<8x256xi32>
    %16 = arith.cmpi ne, %14, %15 : vector<8x256xi32>
    %c0_i32_7 = arith.constant 0 : i32
    %17 = vector.broadcast %c0_i32_7 : i32 to vector<8x256xi32>
    %18 = arith.cmpi slt, %14, %17 : vector<8x256xi32>
    %c0_i32_8 = arith.constant 0 : i32
    %19 = arith.cmpi slt, %12, %c0_i32_8 : i32
    %20 = vector.broadcast %19 : i1 to vector<8x256xi1>
    %21 = vector.broadcast %20 : vector<8x256xi1> to vector<8x256xi1>
    %22 = arith.xori %18, %21 : vector<8x256xi1>
    %23 = arith.andi %22, %16 : vector<8x256xi1>
    %24 = vector.broadcast %12 : i32 to vector<8x256xi32>
    %25 = arith.addi %14, %24 : vector<8x256xi32>
    %26 = arith.select %23, %25, %14 : vector<8x256xi1>, vector<8x256xi32>
    %27 = vector.extract_strided_slice %9 {offsets = [0, 239], sizes = [8, 17], strides = [1, 1]} : vector<8x256xf32> to vector<8x17xf32>
    %28 = vector.extract_strided_slice %9 {offsets = [0, 0], sizes = [8, 239], strides = [1, 1]} : vector<8x256xf32> to vector<8x239xf32>
    %29 = tpu.concatenate %27, %28 in 1 : vector<8x17xf32>, vector<8x239xf32> -> vector<8x256xf32>
    %c16_i32_9 = arith.constant 16 : i32
    %30 = vector.broadcast %c16_i32_9 : i32 to vector<8x256xi32>
    %31 = arith.cmpi sge, %10, %30 : vector<8x256xi32>
    %c1_i32_10 = arith.constant 1 : i32
    %32 = vector.broadcast %c1_i32_10 : i32 to vector<8x256xi32>
    %33 = arith.cmpi sge, %26, %32 : vector<8x256xi32>
    %34 = arith.andi %31, %33 : vector<8x256xi1>
    %cst_11 = arith.constant 0.000000e+00 : f32
    %35 = vector.broadcast %cst_11 : f32 to vector<8x256xf32>
    %36 = arith.select %34, %29, %35 : vector<8x256xi1>, vector<8x256xf32>
    %c0_12 = arith.constant 0 : index
    %c0_13 = arith.constant 0 : index
    %37 = vector.load %arg6[%c0_12, %c0_13] : memref<72x256xf32, #tpu.memory_space<vmem>>, vector<8x256xf32>
    tpu.vector_store %arg6[%c0_12, %c0_13], %36 {strides = array<i32>} : memref<72x256xf32, #tpu.memory_space<vmem>>, vector<8x256xf32>,
    %38 = vector.extract_strided_slice %9 {offsets = [0, 240], sizes = [8, 16], strides = [1, 1]} : vector<8x256xf32> to vector<8x16xf32>
    %39 = vector.extract_strided_slice %9 {offsets = [0, 0], sizes = [8, 240], strides = [1, 1]} : vector<8x256xf32> to vector<8x240xf32>
    %40 = tpu.concatenate %38, %39 in 1 : vector<8x16xf32>, vector<8x240xf32> -> vector<8x256xf32>
    %c16_i32_14 = arith.constant 16 : i32
    %41 = vector.broadcast %c16_i32_14 : i32 to vector<8x256xi32>
    %42 = arith.cmpi sge, %10, %41 : vector<8x256xi32>
    %cst_15 = arith.constant 0.000000e+00 : f32
    %43 = vector.broadcast %cst_15 : f32 to vector<8x256xf32>
    %44 = arith.select %42, %40, %43 : vector<8x256xi1>, vector<8x256xf32>
    %c8 = arith.constant 8 : index
    %c0_16 = arith.constant 0 : index
    %45 = vector.load %arg6[%c8, %c0_16] : memref<72x256xf32, #tpu.memory_space<vmem>>, vector<8x256xf32>
    tpu.vector_store %arg6[%c8, %c0_16], %44 {strides = array<i32>} : memref<72x256xf32, #tpu.memory_space<vmem>>, vector<8x256xf32>,
    %46 = vector.extract_strided_slice %9 {offsets = [0, 241], sizes = [8, 15], strides = [1, 1]} : vector<8x256xf32> to vector<8x15xf32>
    %47 = vector.extract_strided_slice %9 {offsets = [0, 0], sizes = [8, 241], strides = [1, 1]} : vector<8x256xf32> to vector<8x241xf32>
    %48 = tpu.concatenate %46, %47 in 1 : vector<8x15xf32>, vector<8x241xf32> -> vector<8x256xf32>
    %c16_i32_17 = arith.constant 16 : i32
    %49 = vector.broadcast %c16_i32_17 : i32 to vector<8x256xi32>
    %50 = arith.cmpi sge, %10, %49 : vector<8x256xi32>
    %c15_i32 = arith.constant 15 : i32
    %51 = vector.broadcast %c15_i32 : i32 to vector<8x256xi32>
    %52 = arith.cmpi slt, %26, %51 : vector<8x256xi32>
    %53 = arith.andi %50, %52 : vector<8x256xi1>
    %cst_18 = arith.constant 0.000000e+00 : f32
    %54 = vector.broadcast %cst_18 : f32 to vector<8x256xf32>
    %55 = arith.select %53, %48, %54 : vector<8x256xi1>, vector<8x256xf32>
    %c16 = arith.constant 16 : index
    %c0_19 = arith.constant 0 : index
    %56 = vector.load %arg6[%c16, %c0_19] : memref<72x256xf32, #tpu.memory_space<vmem>>, vector<8x256xf32>
    tpu.vector_store %arg6[%c16, %c0_19], %55 {strides = array<i32>} : memref<72x256xf32, #tpu.memory_space<vmem>>, vector<8x256xf32>,
    %57 = vector.extract_strided_slice %9 {offsets = [0, 255], sizes = [8, 1], strides = [1, 1]} : vector<8x256xf32> to vector<8x1xf32>
    %58 = vector.extract_strided_slice %9 {offsets = [0, 0], sizes = [8, 255], strides = [1, 1]} : vector<8x256xf32> to vector<8x255xf32>
    %59 = tpu.concatenate %57, %58 in 1 : vector<8x1xf32>, vector<8x255xf32> -> vector<8x256xf32>
    %c1_i32_20 = arith.constant 1 : i32
    %60 = vector.broadcast %c1_i32_20 : i32 to vector<8x256xi32>
    %61 = arith.cmpi sge, %26, %60 : vector<8x256xi32>
    %cst_21 = arith.constant 0.000000e+00 : f32
    %62 = vector.broadcast %cst_21 : f32 to vector<8x256xf32>
    %63 = arith.select %61, %59, %62 : vector<8x256xi1>, vector<8x256xf32>
    %c24 = arith.constant 24 : index
    %c0_22 = arith.constant 0 : index
    %64 = vector.load %arg6[%c24, %c0_22] : memref<72x256xf32, #tpu.memory_space<vmem>>, vector<8x256xf32>
    tpu.vector_store %arg6[%c24, %c0_22], %63 {strides = array<i32>} : memref<72x256xf32, #tpu.memory_space<vmem>>, vector<8x256xf32>,
    %c32 = arith.constant 32 : index
    %c0_23 = arith.constant 0 : index
    %65 = vector.load %arg6[%c32, %c0_23] : memref<72x256xf32, #tpu.memory_space<vmem>>, vector<8x256xf32>
    tpu.vector_store %arg6[%c32, %c0_23], %9 {strides = array<i32>} : memref<72x256xf32, #tpu.memory_space<vmem>>, vector<8x256xf32>,
    %66 = vector.extract_strided_slice %9 {offsets = [0, 1], sizes = [8, 255], strides = [1, 1]} : vector<8x256xf32> to vector<8x255xf32>
    %67 = vector.extract_strided_slice %9 {offsets = [0, 0], sizes = [8, 1], strides = [1, 1]} : vector<8x256xf32> to vector<8x1xf32>
    %68 = tpu.concatenate %66, %67 in 1 : vector<8x255xf32>, vector<8x1xf32> -> vector<8x256xf32>
    %c15_i32_24 = arith.constant 15 : i32
    %69 = vector.broadcast %c15_i32_24 : i32 to vector<8x256xi32>
    %70 = arith.cmpi slt, %26, %69 : vector<8x256xi32>
    %cst_25 = arith.constant 0.000000e+00 : f32
    %71 = vector.broadcast %cst_25 : f32 to vector<8x256xf32>
    %72 = arith.select %70, %68, %71 : vector<8x256xi1>, vector<8x256xf32>
    %c40 = arith.constant 40 : index
    %c0_26 = arith.constant 0 : index
    %73 = vector.load %arg6[%c40, %c0_26] : memref<72x256xf32, #tpu.memory_space<vmem>>, vector<8x256xf32>
    tpu.vector_store %arg6[%c40, %c0_26], %72 {strides = array<i32>} : memref<72x256xf32, #tpu.memory_space<vmem>>, vector<8x256xf32>,
    %74 = vector.extract_strided_slice %9 {offsets = [0, 15], sizes = [8, 241], strides = [1, 1]} : vector<8x256xf32> to vector<8x241xf32>
    %75 = vector.extract_strided_slice %9 {offsets = [0, 0], sizes = [8, 15], strides = [1, 1]} : vector<8x256xf32> to vector<8x15xf32>
    %76 = tpu.concatenate %74, %75 in 1 : vector<8x241xf32>, vector<8x15xf32> -> vector<8x256xf32>
    %c240_i32 = arith.constant 240 : i32
    %77 = vector.broadcast %c240_i32 : i32 to vector<8x256xi32>
    %78 = arith.cmpi slt, %10, %77 : vector<8x256xi32>
    %c1_i32_27 = arith.constant 1 : i32
    %79 = vector.broadcast %c1_i32_27 : i32 to vector<8x256xi32>
    %80 = arith.cmpi sge, %26, %79 : vector<8x256xi32>
    %81 = arith.andi %78, %80 : vector<8x256xi1>
    %cst_28 = arith.constant 0.000000e+00 : f32
    %82 = vector.broadcast %cst_28 : f32 to vector<8x256xf32>
    %83 = arith.select %81, %76, %82 : vector<8x256xi1>, vector<8x256xf32>
    %c48 = arith.constant 48 : index
    %c0_29 = arith.constant 0 : index
    %84 = vector.load %arg6[%c48, %c0_29] : memref<72x256xf32, #tpu.memory_space<vmem>>, vector<8x256xf32>
    tpu.vector_store %arg6[%c48, %c0_29], %83 {strides = array<i32>} : memref<72x256xf32, #tpu.memory_space<vmem>>, vector<8x256xf32>,
    %85 = vector.extract_strided_slice %9 {offsets = [0, 16], sizes = [8, 240], strides = [1, 1]} : vector<8x256xf32> to vector<8x240xf32>
    %86 = vector.extract_strided_slice %9 {offsets = [0, 0], sizes = [8, 16], strides = [1, 1]} : vector<8x256xf32> to vector<8x16xf32>
    %87 = tpu.concatenate %85, %86 in 1 : vector<8x240xf32>, vector<8x16xf32> -> vector<8x256xf32>
    %c240_i32_30 = arith.constant 240 : i32
    %88 = vector.broadcast %c240_i32_30 : i32 to vector<8x256xi32>
    %89 = arith.cmpi slt, %10, %88 : vector<8x256xi32>
    %cst_31 = arith.constant 0.000000e+00 : f32
    %90 = vector.broadcast %cst_31 : f32 to vector<8x256xf32>
    %91 = arith.select %89, %87, %90 : vector<8x256xi1>, vector<8x256xf32>
    %c56 = arith.constant 56 : index
    %c0_32 = arith.constant 0 : index
    %92 = vector.load %arg6[%c56, %c0_32] : memref<72x256xf32, #tpu.memory_space<vmem>>, vector<8x256xf32>
    tpu.vector_store %arg6[%c56, %c0_32], %91 {strides = array<i32>} : memref<72x256xf32, #tpu.memory_space<vmem>>, vector<8x256xf32>,
    %93 = vector.extract_strided_slice %9 {offsets = [0, 17], sizes = [8, 239], strides = [1, 1]} : vector<8x256xf32> to vector<8x239xf32>
    %94 = vector.extract_strided_slice %9 {offsets = [0, 0], sizes = [8, 17], strides = [1, 1]} : vector<8x256xf32> to vector<8x17xf32>
    %95 = tpu.concatenate %93, %94 in 1 : vector<8x239xf32>, vector<8x17xf32> -> vector<8x256xf32>
    %c240_i32_33 = arith.constant 240 : i32
    %96 = vector.broadcast %c240_i32_33 : i32 to vector<8x256xi32>
    %97 = arith.cmpi slt, %10, %96 : vector<8x256xi32>
    %c15_i32_34 = arith.constant 15 : i32
    %98 = vector.broadcast %c15_i32_34 : i32 to vector<8x256xi32>
    %99 = arith.cmpi slt, %26, %98 : vector<8x256xi32>
    %100 = arith.andi %97, %99 : vector<8x256xi1>
    %cst_35 = arith.constant 0.000000e+00 : f32
    %101 = vector.broadcast %cst_35 : f32 to vector<8x256xf32>
    %102 = arith.select %100, %95, %101 : vector<8x256xi1>, vector<8x256xf32>
    %c64 = arith.constant 64 : index
    %c0_36 = arith.constant 0 : index
    %103 = vector.load %arg6[%c64, %c0_36] : memref<72x256xf32, #tpu.memory_space<vmem>>, vector<8x256xf32>
    tpu.vector_store %arg6[%c64, %c0_36], %102 {strides = array<i32>} : memref<72x256xf32, #tpu.memory_space<vmem>>, vector<8x256xf32>,
    %c0_37 = arith.constant 0 : index
    %c0_38 = arith.constant 0 : index
    %104 = vector.load %arg4[%c0_37, %c0_38] : memref<8x72xf32, #tpu.memory_space<vmem>>, vector<8x72xf32>
    %c0_39 = arith.constant 0 : index
    %c0_40 = arith.constant 0 : index
    %105 = vector.load %arg6[%c0_39, %c0_40] : memref<72x256xf32, #tpu.memory_space<vmem>>, vector<72x256xf32>
    %cst_41 = arith.constant dense<0.000000e+00> : vector<8x256xf32>
    %106 = tpu.matmul %104, %105, %cst_41 {dimension_numbers = #tpu.dot_dimension_numbers<[1], [0], [0], [1], [0, 0, 1, 1], [], []>} : vector<8x72xf32>, vector<72x256xf32>, vector<8x256xf32> -> vector<8x256xf32>
    %c0_42 = arith.constant 0 : index
    %c0_43 = arith.constant 0 : index
    %c0_44 = arith.constant 0 : index
    %107 = vector.load %arg1[%c0_42, %c0_43, %c0_44] : memref<1x8x256xf32, #tpu.memory_space<vmem>>, vector<1x4x256xf32>
    %108 = vector.shape_cast %107 : vector<1x4x256xf32> to vector<4x256xf32>
    %c0_45 = arith.constant 0 : index
    %c0_46 = arith.constant 0 : index
    %c0_47 = arith.constant 0 : index
    %109 = vector.load %arg5[%c0_45, %c0_46, %c0_47] : memref<1x12x256xf32, #tpu.memory_space<vmem>>, vector<1x4x256xf32>
    %110 = vector.shape_cast %109 : vector<1x4x256xf32> to vector<4x256xf32>
    %111 = vector.shape_cast %108 : vector<4x256xf32> to vector<1x4x256xf32>
    tpu.vector_store %arg5[%c0_45, %c0_46, %c0_47], %111 {strides = array<i32>} : memref<1x12x256xf32, #tpu.memory_space<vmem>>, vector<1x4x256xf32>,
    %c0_48 = arith.constant 0 : index
    %c4 = arith.constant 4 : index
    %c0_49 = arith.constant 0 : index
    %112 = vector.load %arg5[%c0_48, %c4, %c0_49] : memref<1x12x256xf32, #tpu.memory_space<vmem>>, vector<1x8x256xf32>
    %113 = vector.shape_cast %112 : vector<1x8x256xf32> to vector<8x256xf32>
    %114 = vector.shape_cast %106 : vector<8x256xf32> to vector<1x8x256xf32>
    tpu.vector_store %arg5[%c0_48, %c4, %c0_49], %114 {strides = array<i32>} : memref<1x12x256xf32, #tpu.memory_space<vmem>>, vector<1x8x256xf32>,
    return
  }
  func.func @transform_0(%arg0: i32) -> (i32, i32, i32) {
    %c0_i32 = arith.constant 0 : i32
    %c0_i32_0 = arith.constant 0 : i32
    %c0_i32_1 = arith.constant 0 : i32
    return %arg0, %c0_i32, %c0_i32_0 : i32, i32, i32
  }
  func.func @transform_1(%arg0: i32) -> (i32, i32) {
    %c0_i32 = arith.constant 0 : i32
    %c0_i32_0 = arith.constant 0 : i32
    %c0_i32_1 = arith.constant 0 : i32
    return %c0_i32, %c0_i32_0 : i32, i32
  }
  func.func @transform_2(%arg0: i32) -> (i32, i32) {
    %c0_i32 = arith.constant 0 : i32
    %c0_i32_0 = arith.constant 0 : i32
    %c0_i32_1 = arith.constant 0 : i32
    return %c0_i32, %c0_i32_0 : i32, i32
  }
  func.func @transform_3(%arg0: i32) -> (i32, i32) {
    %c0_i32 = arith.constant 0 : i32
    %c0_i32_0 = arith.constant 0 : i32
    %c0_i32_1 = arith.constant 0 : i32
    return %c0_i32, %c0_i32_0 : i32, i32
  }
  func.func @transform_4(%arg0: i32) -> (i32, i32, i32) {
    %c0_i32 = arith.constant 0 : i32
    %c0_i32_0 = arith.constant 0 : i32
    %c0_i32_1 = arith.constant 0 : i32
    return %arg0, %c0_i32, %c0_i32_0 : i32, i32, i32
  }
}

</mosaic_0001>

<llo_original>
// kernel: tpu_custom_call.1
$region0: #{tpu_custom_call.1}
  #allocation0 [shape = 'u32[]', space=smem, size = 0x4, offset = 0x4, fixed_abs, tag = 'smem constant byte address 0x4 - core index']
  #allocation1 [shape = 'u32[72,128]{1,0:T(1,128)}', space=vmem, size = 0x9000, scoped, tag = 'internal scratch']
  #allocation2 [shape = 'f32[72,256]{1,0:T(8,128)}', space=vmem, size = 0x12000, scoped, tag = 'scratch operand']
  %s0 = inlined_call_operand.hbm [shape: f32[2,8,256], index: 0, kind: input, shape index: {}]
  %s1 = inlined_call_operand.vmem [shape: f32[8,1], index: 1, kind: input, shape index: {}]
  %s2 = inlined_call_operand.vmem [shape: f32[8,1], index: 2, kind: input, shape index: {}]
  %s3 = inlined_call_operand.vmem [shape: f32[8,72], index: 3, kind: input, shape index: {}]
  %s4 = inlined_call_operand.vmem [shape: f32[2,12,256], index: 4, kind: output, shape index: {}]
  %s5 = sld [smem:[#allocation0]]
  $region53: #{tpu_custom_call.1} parent=0
    _
  %s7 = ssub.s32 1, %s5
  %s8 = scalar_select 0, %s7, %s5
  $region1: #{tpu_custom_call.1} parent=0
    #allocation3 [shape = 'u8[16384]{0}', space=vmem, size = 0x4000, scoped, tag = 'input window, operand 0']
    #allocation4 [shape = 's32[2]{0}', space=sflag, size = 0x8, scoped, tag = 'scoped memory for tpu_custom_call.1']
    %9 = vsyncpa [#allocation4], 0
    %s10 = scalar_lea.sflag [#allocation4], 1
    %11 = vsyncpa %s10, 0
    loop: start=0, step=1, limit=4
    $region2: #{tpu_custom_call.1} parent=1 // loop_pre_header
      _
    $region3: #{tpu_custom_call.1} parent=1 // loop_header
      %s13 = sphi 0, %s17
      %p14 = scmp.ge.s32.totalorder %s13, 4
      %s23 = sphi 0, %s25
      %s26 = sphi 0, %s23
      %s27 = sphi 0, %s26
      %s43 = sphi 0, %s27
      %s47 = sphi 0, %s47
      %s49 = sphi 0, %s47
      %s50 = sphi 0, %s49
      %s64 = sphi 0, %s50
      %s68 = sphi 0, %s68
      %s70 = sphi 0, %s68
      %s71 = sphi 0, %s70
      %s85 = sphi 0, %s71
      %s89 = sphi 0, %s89
      %s91 = sphi 0, %s89
      %s92 = sphi 0, %s91
      %s106 = sphi 0, %s92
      %s112 = sphi 0, %s114
      %s115 = sphi 0, %s112
      %s116 = sphi 0, %s115
      %s132 = sphi 0, %s116
    $region4: #{tpu_custom_call.1} parent=1 // loop_header_branch
      %16 = sbr.rel (%p14) target = $region8
    $region5: #{tpu_custom_call.1} parent=1 // loop_body
      %s18 = ssub.s32 %s13, 1
      %s19 = ssub.s32 %s13, 2
      %s20 = sadd.s32 %s13, 1
      %s21 = ssub.s32 %s13, %s20
      %p22 = scmp.eq.s32.totalorder %s21, 0
      %s24 = sadd.s32 %s23, 1
      %s25 = scalar_select %p22, %s23, %s24
      %p28 = pneg %p22
      %p29 = scmp.eq.s32.totalorder %s13, 1
      %p30 = por %p28, %p29
      %p31 = scmp.ne.s32.totalorder %s23, %s26
      %p32 = scmp.eq.s32.totalorder %s13, 0
      %p33 = por %p31, %p32
      %p34 = scmp.ne.s32.totalorder %s23, %s26
      %p35 = scmp.eq.s32.totalorder %s18, 1
      %p36 = por %p34, %p35
      %p37 = scmp.ne.s32.totalorder %s26, %s27
      %p38 = scmp.eq.s32.totalorder %s18, 0
      %p39 = por %p37, %p38
      %p40 = scmp.ne.s32.totalorder %s26, %s27
      %p41 = scmp.eq.s32.totalorder %s19, 1
      %p42 = por %p40, %p41
      %p44 = scmp.ne.s32.totalorder %s27, %s43
      %p45 = scmp.eq.s32.totalorder %s19, 0
      %p46 = por %p44, %p45
      %s48 = sadd.s32 %s47, 1
      %p51 = scmp.eq.s32.totalorder %s13, 1
      %p52 = scmp.ne.s32.totalorder %s47, %s49
      %p53 = scmp.eq.s32.totalorder %s13, 0
      %p54 = por %p52, %p53
      %p55 = scmp.ne.s32.totalorder %s47, %s49
      %p56 = scmp.eq.s32.totalorder %s18, 1
      %p57 = por %p55, %p56
      %p58 = scmp.ne.s32.totalorder %s49, %s50
      %p59 = scmp.eq.s32.totalorder %s18, 0
      %p60 = por %p58, %p59
      %p61 = scmp.ne.s32.totalorder %s49, %s50
      %p62 = scmp.eq.s32.totalorder %s19, 1
      %p63 = por %p61, %p62
      %p65 = scmp.ne.s32.totalorder %s50, %s64
      %p66 = scmp.eq.s32.totalorder %s19, 0
      %p67 = por %p65, %p66
      %s69 = sadd.s32 %s68, 1
      %p72 = scmp.eq.s32.totalorder %s13, 1
      %p73 = scmp.ne.s32.totalorder %s68, %s70
      %p74 = scmp.eq.s32.totalorder %s13, 0
      %p75 = por %p73, %p74
      %p76 = scmp.ne.s32.totalorder %s68, %s70
      %p77 = scmp.eq.s32.totalorder %s18, 1
      %p78 = por %p76, %p77
      %p79 = scmp.ne.s32.totalorder %s70, %s71
      %p80 = scmp.eq.s32.totalorder %s18, 0
      %p81 = por %p79, %p80
      %p82 = scmp.ne.s32.totalorder %s70, %s71
      %p83 = scmp.eq.s32.totalorder %s19, 1
      %p84 = por %p82, %p83
      %p86 = scmp.ne.s32.totalorder %s71, %s85
      %p87 = scmp.eq.s32.totalorder %s19, 0
      %p88 = por %p86, %p87
      %s90 = sadd.s32 %s89, 1
      %p93 = scmp.eq.s32.totalorder %s13, 1
      %p94 = scmp.ne.s32.totalorder %s89, %s91
      %p95 = scmp.eq.s32.totalorder %s13, 0
      %p96 = por %p94, %p95
      %p97 = scmp.ne.s32.totalorder %s89, %s91
      %p98 = scmp.eq.s32.totalorder %s18, 1
      %p99 = por %p97, %p98
      %p100 = scmp.ne.s32.totalorder %s91, %s92
      %p101 = scmp.eq.s32.totalorder %s18, 0
      %p102 = por %p100, %p101
      %p103 = scmp.ne.s32.totalorder %s91, %s92
      %p104 = scmp.eq.s32.totalorder %s19, 1
      %p105 = por %p103, %p104
      %p107 = scmp.ne.s32.totalorder %s92, %s106
      %p108 = scmp.eq.s32.totalorder %s19, 0
      %p109 = por %p107, %p108
      %s110 = ssub.s32 %s13, %s20
      %p111 = scmp.eq.s32.totalorder %s110, 0
      %s113 = sadd.s32 %s112, 1
      %s114 = scalar_select %p111, %s112, %s113
      %p117 = pneg %p111
      %p118 = scmp.eq.s32.totalorder %s13, 1
      %p119 = por %p117, %p118
      %p120 = scmp.ne.s32.totalorder %s112, %s115
      %p121 = scmp.eq.s32.totalorder %s13, 0
      %p122 = por %p120, %p121
      %p123 = scmp.ne.s32.totalorder %s112, %s115
      %p124 = scmp.eq.s32.totalorder %s18, 1
      %p125 = por %p123, %p124
      %p126 = scmp.ne.s32.totalorder %s115, %s116
      %p127 = scmp.eq.s32.totalorder %s18, 0
      %p128 = por %p126, %p127
      %p129 = scmp.ne.s32.totalorder %s115, %s116
      %p130 = scmp.eq.s32.totalorder %s19, 1
      %p131 = por %p129, %p130
      %p133 = scmp.ne.s32.totalorder %s116, %s132
      %p134 = scmp.eq.s32.totalorder %s19, 0
      %p135 = por %p133, %p134
      %p136 = scmp.le.s32.totalorder 1, %s13
      %p137 = scmp.lt.s32.totalorder %s13, 3
      %p138 = pnand %p136, %p137
      %p139 = pneg %p138
      // Predicated region
      $region9: #{tpu_custom_call.1} parent=5 // pred_check
        _
      $region10: #{tpu_custom_call.1} parent=5 // pred_check_branch
        %141 = sbr.rel (%p138) target = $region12
      $region11: #{tpu_custom_call.1} parent=5 // pred_region
        %s142 = ssub.s32 %s13, 1
        // Predicated region
        $region13: #{tpu_custom_call.1} parent=11 // pred_check
          %p143 = pneg %p60
        $region14: #{tpu_custom_call.1} parent=11 // pred_check_branch
          %145 = sbr.rel (%p143) target = $region16
        $region15: #{tpu_custom_call.1} parent=11 // pred_region
          _
        $region16: #{tpu_custom_call.1} parent=11 // pred_fallthru
          _
        // Predicated region
        $region17: #{tpu_custom_call.1} parent=11 // pred_check
          %p146 = pneg %p81
        $region18: #{tpu_custom_call.1} parent=11 // pred_check_branch
          %148 = sbr.rel (%p146) target = $region20
        $region19: #{tpu_custom_call.1} parent=11 // pred_region
          _
        $region20: #{tpu_custom_call.1} parent=11 // pred_fallthru
          _
        // Predicated region
        $region21: #{tpu_custom_call.1} parent=11 // pred_check
          %p149 = pneg %p102
        $region22: #{tpu_custom_call.1} parent=11 // pred_check_branch
          %151 = sbr.rel (%p149) target = $region24
        $region23: #{tpu_custom_call.1} parent=11 // pred_region
          _
        $region24: #{tpu_custom_call.1} parent=11 // pred_fallthru
          _
      $region12: #{tpu_custom_call.1} parent=5 // pred_fallthru
        _
      %p152 = scmp.lt.s32.totalorder %s13, 2
      // Predicated region
      $region25: #{tpu_custom_call.1} parent=5 // pred_check
        %p153 = pneg %p152
      $region26: #{tpu_custom_call.1} parent=5 // pred_check_branch
        %155 = sbr.rel (%p153) target = $region28
      $region27: #{tpu_custom_call.1} parent=5 // pred_region
        // Predicated region
        $region29: #{tpu_custom_call.1} parent=27 // pred_check
          %p156 = pneg %p33
        $region30: #{tpu_custom_call.1} parent=27 // pred_check_branch
          %158 = sbr.rel (%p156) target = $region32
        $region31: #{tpu_custom_call.1} parent=27 // pred_region
          %s159 = sand.u32 %s23, 1
          %s160 = scalar_lea.sflag [#allocation4], %s159
          %s161 = sand.u32 %s23, 1
          %s162 = smul.addr %s161, 16
          %s163 = scalar_lea.vmem [#allocation3], %s162
          %165 = vsyncadd %s160, 0
          %s166 = smul.addr %s13, 2
          %s167 = smul.addr %s166, 8
          %s168 = scalar_lea.hbm %s0, %s167
          %s170 = sshll.u32 %s168, 4
          %s171 = int_to_ptr.hbm [resolvable:$true] %s170
          %s172 = sshll.u32 %s163, 4
          %s173 = int_to_ptr.vmem [resolvable:$true] %s172
          %175 = dma.hbm_to_vmem [thread:$0]  %s171, 256, %s173, %s160
        $region32: #{tpu_custom_call.1} parent=27 // pred_fallthru
          _
      $region28: #{tpu_custom_call.1} parent=5 // pred_fallthru
        _
      %p176 = scmp.le.s32.totalorder 1, %s13
      %p177 = scmp.lt.s32.totalorder %s13, 3
      %p178 = pnand %p176, %p177
      %p179 = pneg %p178
      // Predicated region
      $region33: #{tpu_custom_call.1} parent=5 // pred_check
        _
      $region34: #{tpu_custom_call.1} parent=5 // pred_check_branch
        %181 = sbr.rel (%p178) target = $region36
      $region35: #{tpu_custom_call.1} parent=5 // pred_region
        %s182 = ssub.s32 %s13, 1
        %s183 = sand.u32 %s26, 1
        %s184 = scalar_lea.sflag [#allocation4], %s183
        %s185 = sand.u32 %s26, 1
        %s186 = smul.addr %s185, 16
        %s187 = scalar_lea.vmem [#allocation3], %s186
        // Predicated region
        $region37: #{tpu_custom_call.1} parent=35 // pred_check
          %p188 = pneg %p39
        $region38: #{tpu_custom_call.1} parent=35 // pred_check_branch
          %190 = sbr.rel (%p188) target = $region40
        $region39: #{tpu_custom_call.1} parent=35 // pred_region
          %192 = dma.done %s184, 256
        $region40: #{tpu_custom_call.1} parent=35 // pred_fallthru
          _
        %s193 = sand.u32 %s26, 1
        %s194 = scalar_lea.sflag [#allocation4], %s193
        %s195 = sand.u32 %s26, 1
        %s196 = smul.addr %s195, 16
        %s197 = scalar_lea.vmem [#allocation3], %s196
        %p198 = pneg %p39
        %p199 = pneg %p36
        %p200 = pneg %p60
        %p201 = pneg %p57
        %p202 = pneg %p81
        %p203 = pneg %p78
        %p204 = pneg %p102
        %p205 = pneg %p99
        %p206 = pneg %p128
        %p207 = pneg %p125
        %p208 = scmp.lt.s32.totalorder %s18, 1
        %s209 = scalar_select %p208, %s18, 1
        %s210 = smul.addr %s209, 4
        %s211 = smul.addr %s210, 8
        %s212 = scalar_lea.vmem %s4, %s211
        %p213 = scmp.lt.s32.totalorder %s18, 1
        %s214 = scalar_select %p213, %s18, 1
        %s215 = smul.addr %s214, 4
        %s216 = smul.addr %s215, 8
        %s217 = scalar_lea.vmem %s4, %s216
        %v218 = vld [vmem:[%s187] sm:$0xff]
        %v219 = vld [vmem:[%s187 + $0x8] sm:$0xff]
        %v220 = vld [vmem:[%s1] sm:$0xff]
        %222 = vset.pattern.permute.xlu0 0
        %223 = vperm.xlu0 %222, %v220
        %v224 = vpop.permute.xlu0 %223
        %v226 = vmul.f32 %v218, %v224
        %v227 = vmul.f32 %v219, %v224
        %v228 = vld [vmem:[%s2] sm:$0xff]
        %230 = vset.pattern.permute.xlu0 0
        %231 = vperm.xlu0 %230, %v228
        %v232 = vpop.permute.xlu0 %231
        %v234 = vadd.f32 %v226, %v232
        %v235 = vadd.f32 %v227, %v232
        %v236 = vmax.f32 %v234, 0.0
        %v237 = vmax.f32 %v235, 0.0
        %v238 = vlaneseq
        %v239 = vand.u32 %v238, 127
        %v240 = vadd.s32 %v239, 128
        %vm241 = vcmp.lt.s32.totalorder %v239, 0
        %v242 = vsub.s32 0, %v239
        %v243 = vsel %vm241, %v242, %v239
        %v244 = vshrl.u32 %v243, 4
        %v245 = vand.u32 %v243, 15
        %v246 = vsub.s32 0, %v245
        %v247 = vsel %vm241, %v246, %v245
        %vm248 = vcmp.lt.s32.totalorder %v240, 0
        %v249 = vsub.s32 0, %v240
        %v250 = vsel %vm248, %v249, %v240
        %v251 = vshrl.u32 %v250, 4
        %v252 = vand.u32 %v250, 15
        %v253 = vsub.s32 0, %v252
        %v254 = vsel %vm248, %v253, %v252
        %vm255 = vcmp.ne.s32.totalorder %v247, 0
        %vm256 = vcmp.ne.s32.totalorder %v254, 0
        %vm257 = vcmp.lt.s32.totalorder %v247, 0
        %vm258 = vcmp.lt.s32.totalorder %v254, 0
        %vm259 = vmand %vm257, %vm255
        %vm260 = vmand %vm258, %vm256
        %v261 = vadd.s32 %v247, 16
        %v262 = vadd.s32 %v254, 16
        %v263 = vsel %vm259, %v261, %v247
        %v264 = vsel %vm260, %v262, %v254
        %266 = vrot.lane.b32.xlu0 %v237, 17
        %v267 = vpop.permute.xlu0 %266
        %270 = vrot.lane.b32.xlu0 %v236, 17
        %v271 = vpop.permute.xlu0 %270
        %vm272 = vcmask 138240
        %v273 = vsel %vm272, %v271, %v267
        %v276 = vsel %vm272, %v267, %v271
        %vm277 = vcmp.ge.s32.totalorder %v239, 16
        %vm278 = vcmp.ge.s32.totalorder %v240, 16
        %vm279 = vcmp.ge.s32.totalorder %v263, 1
        %vm280 = vcmp.ge.s32.totalorder %v264, 1
        %vm281 = vmand %vm277, %vm279
        %vm282 = vmand %vm278, %vm280
        %v283 = vsel %vm281, %v276, 0.0
        %v284 = vsel %vm282, %v273, 0.0
        %285 = vst [vmem:[#allocation2] sm:$0xff] %v283
        %286 = vst [vmem:[#allocation2 + $0x8] sm:$0xff] %v284
        %287 = vrot.lane.b32.xlu0 %v237, 16
        %v288 = vpop.permute.xlu0 %287
        %290 = vrot.lane.b32.xlu0 %v236, 16
        %v291 = vpop.permute.xlu0 %290
        %vm292 = vcmask 130048
        %v293 = vsel %vm292, %v291, %v288
        %v296 = vsel %vm292, %v288, %v291
        %v297 = vsel %vm277, %v296, 0.0
        %v298 = vsel %vm278, %v293, 0.0
        %299 = vst [vmem:[#allocation2 + $0x10] sm:$0xff] %v297
        %300 = vst [vmem:[#allocation2 + $0x18] sm:$0xff] %v298
        %301 = vrot.lane.b32.xlu0 %v237, 15
        %v302 = vpop.permute.xlu0 %301
        %304 = vrot.lane.b32.xlu0 %v236, 15
        %v305 = vpop.permute.xlu0 %304
        %vm306 = vcmask 121856
        %v307 = vsel %vm306, %v305, %v302
        %v310 = vsel %vm306, %v302, %v305
        %vm311 = vcmp.lt.s32.totalorder %v263, 15
        %vm312 = vcmp.lt.s32.totalorder %v264, 15
        %vm313 = vmand %vm277, %vm311
        %vm314 = vmand %vm278, %vm312
        %v315 = vsel %vm313, %v310, 0.0
        %v316 = vsel %vm314, %v307, 0.0
        %317 = vst [vmem:[#allocation2 + $0x20] sm:$0xff] %v315
        %318 = vst [vmem:[#allocation2 + $0x28] sm:$0xff] %v316
        %319 = vrot.lane.b32.xlu0 %v237, 1
        %v320 = vpop.permute.xlu0 %319
        %322 = vrot.lane.b32.xlu0 %v236, 1
        %v323 = vpop.permute.xlu0 %322
        %vm324 = vcmask 7168
        %v325 = vsel %vm324, %v323, %v320
        %v328 = vsel %vm324, %v320, %v323
        %v329 = vsel %vm279, %v328, 0.0
        %v330 = vsel %vm280, %v325, 0.0
        %331 = vst [vmem:[#allocation2 + $0x30] sm:$0xff] %v329
        %332 = vst [vmem:[#allocation2 + $0x38] sm:$0xff] %v330
        %333 = vst [vmem:[#allocation2 + $0x40] sm:$0xff] %v236
        %334 = vst [vmem:[#allocation2 + $0x48] sm:$0xff] %v237
        %335 = vrot.lane.b32.xlu0 %v236, 127
        %v336 = vpop.permute.xlu0 %335
        %337 = vrot.lane.b32.xlu0 %v237, 127
        %v338 = vpop.permute.xlu0 %337
        %vm339 = vcmask 1039360
        %v340 = vsel %vm339, %v336, %v338
        %v344 = vsel %vm339, %v338, %v336
        %v345 = vsel %vm311, %v340, 0.0
        %v346 = vsel %vm312, %v344, 0.0
        %347 = vst [vmem:[#allocation2 + $0x50] sm:$0xff] %v345
        %348 = vst [vmem:[#allocation2 + $0x58] sm:$0xff] %v346
        %349 = vrot.lane.b32.xlu0 %v236, 113
        %v350 = vpop.permute.xlu0 %349
        %351 = vrot.lane.b32.xlu0 %v237, 113
        %v352 = vpop.permute.xlu0 %351
        %vm353 = vcmask 924672
        %v354 = vsel %vm353, %v350, %v352
        %v358 = vsel %vm353, %v352, %v350
        %vm359 = vcmp.lt.s32.totalorder %v239, 240
        %vm360 = vcmp.lt.s32.totalorder %v240, 240
        %vm361 = vmand %vm359, %vm279
        %vm362 = vmand %vm360, %vm280
        %v363 = vsel %vm361, %v354, 0.0
        %v364 = vsel %vm362, %v358, 0.0
        %365 = vst [vmem:[#allocation2 + $0x60] sm:$0xff] %v363
        %366 = vst [vmem:[#allocation2 + $0x68] sm:$0xff] %v364
        %367 = vrot.lane.b32.xlu0 %v236, 112
        %v368 = vpop.permute.xlu0 %367
        %369 = vrot.lane.b32.xlu0 %v237, 112
        %v370 = vpop.permute.xlu0 %369
        %vm371 = vcmask 916480
        %v372 = vsel %vm371, %v368, %v370
        %v376 = vsel %vm371, %v370, %v368
        %v377 = vsel %vm359, %v372, 0.0
        %v378 = vsel %vm360, %v376, 0.0
        %379 = vst [vmem:[#allocation2 + $0x70] sm:$0xff] %v377
        %380 = vst [vmem:[#allocation2 + $0x78] sm:$0xff] %v378
        %381 = vrot.lane.b32.xlu0 %v236, 111
        %v382 = vpop.permute.xlu0 %381
        %383 = vrot.lane.b32.xlu0 %v237, 111
        %v384 = vpop.permute.xlu0 %383
        %vm385 = vcmask 908288
        %v386 = vsel %vm385, %v382, %v384
        %v390 = vsel %vm385, %v384, %v382
        %vm391 = vmand %vm359, %vm311
        %vm392 = vmand %vm360, %vm312
        %v393 = vsel %vm391, %v386, 0.0
        %v394 = vsel %vm392, %v390, 0.0
        %395 = vst [vmem:[#allocation2 + $0x80] sm:$0xff] %v393
        %396 = vst [vmem:[#allocation2 + $0x88] sm:$0xff] %v394
        %v397 = vld [vmem:[%s3] sm:$0xff]
        %v398 = vld [vmem:[#allocation2] sm:$0xff]
        %v399 = vld [vmem:[#allocation2 + $0x8] sm:$0xff]
        %v400 = vld [vmem:[#allocation2 + $0x10] sm:$0xff]
        %v401 = vld [vmem:[#allocation2 + $0x18] sm:$0xff]
        %v402 = vld [vmem:[#allocation2 + $0x20] sm:$0xff]
        %v403 = vld [vmem:[#allocation2 + $0x28] sm:$0xff]
        %v404 = vld [vmem:[#allocation2 + $0x30] sm:$0xff]
        %v405 = vld [vmem:[#allocation2 + $0x38] sm:$0xff]
        %v406 = vld [vmem:[#allocation2 + $0x40] sm:$0xff]
        %v407 = vld [vmem:[#allocation2 + $0x48] sm:$0xff]
        %v408 = vld [vmem:[#allocation2 + $0x50] sm:$0xff]
        %v409 = vld [vmem:[#allocation2 + $0x58] sm:$0xff]
        %v410 = vld [vmem:[#allocation2 + $0x60] sm:$0xff]
        %v411 = vld [vmem:[#allocation2 + $0x68] sm:$0xff]
        %v412 = vld [vmem:[#allocation2 + $0x70] sm:$0xff]
        %v413 = vld [vmem:[#allocation2 + $0x78] sm:$0xff]
        %v414 = vld [vmem:[#allocation2 + $0x80] sm:$0xff]
        %v415 = vld [vmem:[#allocation2 + $0x88] sm:$0xff]
        %vm416 = vcmask 588800
        %v418 = vsel %vm416, %v397, 0
        %420 = vmatpush.msra.mxu0 0.0
        %421 = vmatpush.msra.mxu0 0.0
        %422 = vmatpush.msra.mxu0 0.0
        %423 = vmatpush.msra.mxu0 0.0
        %424 = vmatpush.msra.mxu0 0.0
        %425 = vmatpush.msra.mxu0 0.0
        %426 = vmatpush.msra.mxu0 0.0
        %427 = vmatpush.msra.mxu0 %v414
        %428 = vmatpush.msra.mxu0 %v412
        %429 = vmatpush.msra.mxu0 %v410
        %430 = vmatpush.msra.mxu0 %v408
        %431 = vmatpush.msra.mxu0 %v406
        %432 = vmatpush.msra.mxu0 %v404
        %433 = vmatpush.msra.mxu0 %v402
        %434 = vmatpush.msra.mxu0 %v400
        %435 = vmatpush.msra.mxu0 %v398
        %436 = vmatmul.f32.gmra.mxu0 %v418
        %v437 = vpop.f32.mrf.mxu0
        %v438 = vadd.f32 0.0, %v437
        %439 = vdwg.mxu0
        %440 = vmatpush.msra.mxu0 0.0
        %441 = vmatpush.msra.mxu0 0.0
        %442 = vmatpush.msra.mxu0 0.0
        %443 = vmatpush.msra.mxu0 0.0
        %444 = vmatpush.msra.mxu0 0.0
        %445 = vmatpush.msra.mxu0 0.0
        %446 = vmatpush.msra.mxu0 0.0
        %447 = vmatpush.msra.mxu0 %v415
        %448 = vmatpush.msra.mxu0 %v413
        %449 = vmatpush.msra.mxu0 %v411
        %450 = vmatpush.msra.mxu0 %v409
        %451 = vmatpush.msra.mxu0 %v407
        %452 = vmatpush.msra.mxu0 %v405
        %453 = vmatpush.msra.mxu0 %v403
        %454 = vmatpush.msra.mxu0 %v401
        %455 = vmatpush.msra.mxu0 %v399
        %456 = vmatmul.f32.gmra.mxu0 %v418
        %v457 = vpop.f32.mrf.mxu0
        %v458 = vadd.f32 0.0, %v457
        %459 = vdwg.mxu0
        %v460 = vld [vmem:[%s187] sm:$0xf]
        %v461 = vld [vmem:[%s187 + $0x8] sm:$0xf]
        %462 = vst [vmem:[%s217] sm:$0xf] %v460
        %463 = vst [vmem:[%s217 + $0x8] sm:$0xf] %v461
        %v466 = vrot.slane %v438, 4
        %v467 = vrot.slane %v458, 4
        %470 = vst [vmem:[%s217] sm:$0xf0] %v466
        %471 = vst [vmem:[%s217 + $0x8] sm:$0xf0] %v467
        %472 = vst [vmem:[%s217 + $0x10] sm:$0xf] %v466
        %473 = vst [vmem:[%s217 + $0x18] sm:$0xf] %v467
        %p474 = scmp.lt.s32.totalorder %s18, 1
        %s475 = scalar_select %p474, %s18, 1
        %s476 = smul.addr %s475, 4
        %s477 = smul.addr %s476, 8
        %s478 = scalar_lea.vmem %s4, %s477
        // Predicated region
        $region41: #{tpu_custom_call.1} parent=35 // pred_check
          %p479 = pneg %p125
        $region42: #{tpu_custom_call.1} parent=35 // pred_check_branch
          %481 = sbr.rel (%p479) target = $region44
        $region43: #{tpu_custom_call.1} parent=35 // pred_region
          _
        $region44: #{tpu_custom_call.1} parent=35 // pred_fallthru
          _
      $region36: #{tpu_custom_call.1} parent=5 // pred_fallthru
        _
      %p482 = scmp.le.s32.totalorder 2, %s13
      // Predicated region
      $region45: #{tpu_custom_call.1} parent=5 // pred_check
        %p483 = pneg %p482
      $region46: #{tpu_custom_call.1} parent=5 // pred_check_branch
        %485 = sbr.rel (%p483) target = $region48
      $region47: #{tpu_custom_call.1} parent=5 // pred_region
        %s486 = ssub.s32 %s13, 2
        // Predicated region
        $region49: #{tpu_custom_call.1} parent=47 // pred_check
          %p487 = pneg %p131
        $region50: #{tpu_custom_call.1} parent=47 // pred_check_branch
          %489 = sbr.rel (%p487) target = $region52
        $region51: #{tpu_custom_call.1} parent=47 // pred_region
          %p490 = scmp.lt.s32.totalorder %s19, 1
          %s491 = scalar_select %p490, %s19, 1
          %s492 = smul.addr %s491, 4
          %s493 = smul.addr %s492, 8
          %s494 = scalar_lea.vmem %s4, %s493
        $region52: #{tpu_custom_call.1} parent=47 // pred_fallthru
          _
      $region48: #{tpu_custom_call.1} parent=5 // pred_fallthru
        _
    $region6: #{tpu_custom_call.1} parent=1 // loop_footer
      %s17 = sadd.s32 1, %s13
    $region7: #{tpu_custom_call.1} parent=1 // loop_footer_branch
      %12 = sbr.rel target = $region3
    $region8: #{tpu_custom_call.1} parent=1 // loop_exit
      _
    %495 = vsyncpa [#allocation4], 1
    %s496 = scalar_lea.sflag [#allocation4], 1
    %497 = vsyncpa %s496, 1

</llo_original>
